<compile_context>
chip_gen: v5e
topology: v5e:2x2
jax: 0.10.0
libtpu: 0.0.40
codegen_flags: <defaults>
</compile_context>

<pallas_src>
import functools

import jax
import jax.numpy as jnp
from jax.experimental import pallas as pl
from jax.experimental.pallas import tpu as pltpu


def vfrm_kernel(seq_len, reduced_dim, approx_recip,
                x_ref, mcat_ref, wcat_ref, wa_ref, weT_ref, be_ref,
                o_ref, s_ref):
    """One grid step: `block_batch` whole sequences, flattened to (M, V) rows."""
    m = x_ref.shape[0]                      # M = block_batch * seq_len
    block_batch = m // seq_len
    R = reduced_dim

    x = x_ref[...]                          # (M, V), matmul dtype (f32 or bf16)

    # Fused PCA + component projection: one MXU pass against
    # W_cat = [comp.T | comp.T @ Wc.T]; both folded means subtracted in f32.
    y = jnp.dot(x, wcat_ref[...], preferred_element_type=jnp.float32)  # (M, 2R)
    y = y - mcat_ref[...]
    pca = y[:, :R]                          # (M, R) f32   (static lane slice)
    comp = jnp.tanh(y[:, R:])               # (M, R) f32   (EUP)

    # attention_fc (R -> 1): VPU broadcast-multiply + lane reduce (no MXU).
    s_ref[...] = jnp.sum(comp * wa_ref[...], axis=-1, keepdims=True)   # (M, 1)

    # Segmented softmax over each length-`seq_len` run of rows. O(M) total:
    # one iteration per sequence, slicing the scratch ref in place; the
    # scratch ends up holding (softmax(scores) + 1).
    @pl.loop(0, block_batch)
    def _(b):
        start = b * seq_len
        if seq_len % 8 == 0:
            start = pl.multiple_of(start, 8)
        seg = s_ref[pl.ds(start, seq_len), :]                # (T, 1)
        seg_max = jnp.max(seg, axis=0, keepdims=True)        # (1, 1)
        e = jnp.exp(seg - seg_max)
        denom = jnp.sum(e, axis=0, keepdims=True)            # (1, 1)
        if approx_recip:
            w = e * pl.reciprocal(denom, approx=True)
        else:
            w = e / denom
        s_ref[pl.ds(start, seq_len), :] = w + 1.0

    # weights * pca + pca == (weights + 1) * pca
    atent = s_ref[...] * pca                                  # (M, R) f32

    # expand_fc (both operands f32; weights are tiny and grid-invariant).
    out = jnp.dot(atent, weT_ref[...], preferred_element_type=jnp.float32)
    out = out + be_ref[...]                                   # (M, V)
    o_ref[...] = out.astype(o_ref.dtype)


def _tpu_defaults():
    """Per-generation tiling defaults (heuristic device_kind sniff)."""
    kind = ""
    try:
        kind = jax.devices()[0].device_kind.lower()
    except Exception:
        pass
    if "v7" in kind or "7x" in kind:
        # 2 TensorCores/chip, only 64 MiB physical VMEM per core.
        return {"num_tensorcores": 2, "budget": 6 << 20, "vmem_limit": 30 << 20}
    if "v6" in kind:
        return {"num_tensorcores": 1, "budget": 8 << 20, "vmem_limit": 48 << 20}
    if "v5p" in kind or "v4" in kind:
        # Megacore generations (2 TCs), 128 MiB VMEM.
        return {"num_tensorcores": 2, "budget": 8 << 20, "vmem_limit": 48 << 20}
    # v5e / unknown: single TC, 16 MiB scoped default -> raise modestly.
    return {"num_tensorcores": 1, "budget": 4 << 20, "vmem_limit": 24 << 20}


def _block_footprint_bytes(mt, visual_dim, reduced_dim, mm_itemsize, out_itemsize):
    """Resident VMEM estimate for one block (both pipelined streams + scratch
    + f32 intermediates)."""
    in_b = 2 * mt * visual_dim * mm_itemsize       # double-buffered x tile
    out_b = 2 * mt * visual_dim * out_itemsize     # double-buffered out tile
    scratch = mt * 512                             # (mt,1) f32, lane-padded to 128
    interm = mt * (4 * reduced_dim + visual_dim) * 4   # y/pca/comp/atent/out f32
    return in_b + out_b + scratch + interm


def _pick_block_batch(batch, seq_len, visual_dim, reduced_dim, mm_itemsize,
                      out_itemsize, num_tensorcores, budget_bytes):
    """Largest divisor of `batch` whose block fits the VMEM budget, respects
    the (8,128) sublane rule, and (on multi-TC chips) keeps the grid a
    multiple of the TensorCore count."""
    divisors = [d for d in range(1, batch + 1) if batch % d == 0]
    # (8,128) rule: block row count multiple of 8, or full row extent.
    valid = [d for d in divisors if (d * seq_len) % 8 == 0 or d == batch]
    if mm_itemsize == 2:
        packed = [d for d in valid if (d * seq_len) % 16 == 0 or d == batch]
        if packed:
            valid = packed
    fitting = [d for d in valid
               if _block_footprint_bytes(d * seq_len, visual_dim, reduced_dim,
                                         mm_itemsize, out_itemsize) <= budget_bytes]
    if not fitting:
        fitting = [min(valid)]
    best = max(fitting)
    if num_tensorcores > 1 and batch >= num_tensorcores:
        mc = [d for d in fitting if (batch // d) % num_tensorcores == 0]
        if mc:
            best = max(mc)
    return best


def vfrm_forward(x, pca_mean, pca_components, wc, wa, we, be, *,
                 matmul_dtype=jnp.float32, out_dtype=jnp.float32,
                 block_batch=None, approx_recip=True,
                 num_tensorcores=None, vmem_block_budget_bytes=None,
                 vmem_limit_bytes=None):
    B, T, V = x.shape
    R = pca_components.shape[0]

    # ---- Host-side prep (tiny XLA ops; all weights grid-invariant) ----
    compT = pca_components.T.astype(jnp.float32)                       # (V, R)
    wcat = jnp.concatenate([compT, compT @ wc.T], axis=1)              # (V, 2R)
    wcat = wcat.astype(matmul_dtype)
    mean_p = (pca_mean.reshape(1, V) @ compT).astype(jnp.float32)      # (1, R)
    mcat = jnp.concatenate([mean_p, mean_p @ wc.T], axis=1)            # (1, 2R)
    mcat = mcat.astype(jnp.float32)
    wa_row = wa.reshape(1, R).astype(jnp.float32)                      # VPU path
    weT = we.T.astype(jnp.float32)                                     # (R, V) f32
    be_row = be.reshape(1, V).astype(jnp.float32)

    x2 = x.reshape(B * T, V).astype(matmul_dtype)                      # (B*T, V)

    defaults = _tpu_defaults()
    if num_tensorcores is None:
        num_tensorcores = defaults["num_tensorcores"]
    if vmem_block_budget_bytes is None:
        vmem_block_budget_bytes = defaults["budget"]
    if vmem_limit_bytes is None:
        vmem_limit_bytes = defaults["vmem_limit"]

    mm_itemsize = jnp.dtype(matmul_dtype).itemsize
    out_itemsize = jnp.dtype(out_dtype).itemsize
    if block_batch is None:
        block_batch = _pick_block_batch(B, T, V, R, mm_itemsize, out_itemsize,
                                        num_tensorcores, vmem_block_budget_bytes)
    if B % block_batch != 0:
        raise ValueError(f"block_batch {block_batch} must divide batch {B}")
    mt = block_batch * T
    if not (mt % 8 == 0 or mt == B * T):
        raise ValueError(
            f"block rows {mt} must be a multiple of 8 or equal {B * T} "
            "(BlockSpec (8,128) sublane rule)")

    kernel = functools.partial(vfrm_kernel, T, R, approx_recip)

    out2 = pl.pallas_call(
        kernel,
        out_shape=jax.ShapeDtypeStruct((B * T, V), out_dtype),
        grid=(B // block_batch,),
        in_specs=[
            pl.BlockSpec((mt, V), lambda b: (b, 0)),       # x rows
            pl.BlockSpec((1, 2 * R), lambda b: (0, 0)),    # folded means
            pl.BlockSpec((V, 2 * R), lambda b: (0, 0)),    # fused W_cat
            pl.BlockSpec((1, R), lambda b: (0, 0)),        # attention_fc W (row)
            pl.BlockSpec((R, V), lambda b: (0, 0)),        # expand_fc W^T (f32)
            pl.BlockSpec((1, V), lambda b: (0, 0)),        # expand_fc bias
        ],
        out_specs=pl.BlockSpec((mt, V), lambda b: (b, 0)),
        scratch_shapes=[pltpu.VMEM((mt, 1), jnp.float32)],
        compiler_params=pltpu.CompilerParams(
            dimension_semantics=("parallel",),
            vmem_limit_bytes=int(vmem_limit_bytes)),
    )(x2, mcat, wcat, wa_row, weT, be_row)

    return out2.reshape(B, T, V).astype(out_dtype)


def vfrm_reference(x, pca_mean, pca_components, wc, wa, we, be):
    """Pure-JAX reference matching the PyTorch forward exactly."""
    pca = jnp.einsum("btv,rv->btr", x - pca_mean[None, None, :], pca_components)
    c = jnp.tanh(jnp.einsum("btr,sr->bts", pca, wc))
    s = jnp.einsum("btr,or->bto", c, wa)                 # (B, T, 1)
    w = jax.nn.softmax(s, axis=1)
    atent = w * pca + pca
    return jnp.einsum("btr,vr->btv", atent, we) + be[None, None, :]


if __name__ == "__main__":
    # Small shapes consistent with the module: visual_dim=32, reduced_dim=16,
    # batch=2, sequence length T=8.
    B, T, V, R = 2, 8, 32, 16

    key = jax.random.PRNGKey(0)
    kx, kmean, kcomp, kwc, kwa, kwe, kbe = jax.random.split(key, 7)

    x = jax.random.normal(kx, (B, T, V), dtype=jnp.float32)

    # Deterministic synthetic parameters (shapes from __init__ / sklearn PCA).
    pca_mean = 0.1 * jax.random.normal(kmean, (V,), dtype=jnp.float32)
    pca_components = 0.2 * jax.random.normal(kcomp, (R, V), dtype=jnp.float32)
    wc = 0.2 * jax.random.normal(kwc, (R, R), dtype=jnp.float32)   # component_fc (no bias)
    wa = 0.2 * jax.random.normal(kwa, (1, R), dtype=jnp.float32)   # attention_fc (no bias)
    we = 0.2 * jax.random.normal(kwe, (V, R), dtype=jnp.float32)   # expand_fc weight
    be = 0.1 * jax.random.normal(kbe, (V,), dtype=jnp.float32)     # expand_fc bias

    ref = vfrm_reference(x, pca_mean, pca_components, wc, wa, we, be)

    # f32 everywhere (tight check; tolerance covers the approx reciprocal and
    # the reassociation from folding the PCA mean / component weight).
    out_f32 = jax.block_until_ready(
        vfrm_forward(x, pca_mean, pca_components, wc, wa, we, be))
    assert out_f32.shape == (B, T, V)
    err_f32 = float(jnp.max(jnp.abs(out_f32 - ref)))
    assert jnp.allclose(out_f32, ref, atol=2e-3, rtol=2e-3), err_f32

    # Force a multi-step grid (block_batch=1) to exercise the pipelined path
    # and the segmented-softmax loop across grid steps.
    out_bb1 = jax.block_until_ready(
        vfrm_forward(x, pca_mean, pca_components, wc, wa, we, be, block_batch=1))
    err_bb1 = float(jnp.max(jnp.abs(out_bb1 - ref)))
    assert jnp.allclose(out_bb1, ref, atol=2e-3, rtol=2e-3), err_bb1

    # bf16 MXU operands for x / first-stage weights + bf16 output (halves the
    # writeback HBM stream); VPU/EUP math and the expand matmul stay f32.
    out_bf16 = jax.block_until_ready(
        vfrm_forward(x, pca_mean, pca_components, wc, wa, we, be,
                     matmul_dtype=jnp.bfloat16, out_dtype=jnp.bfloat16))
    err_bf16 = float(jnp.max(jnp.abs(out_bf16.astype(jnp.float32) - ref)))
    assert jnp.allclose(out_bf16.astype(jnp.float32), ref,
                        atol=2e-1, rtol=2e-1), err_bf16

    print("KERNEL_OK")
</pallas_src>

<mosaic_0001>
module attributes {stable_mosaic.version = 11 : i64} {
  func.func @vfrm_kernel(%arg0: i32, %arg1: memref<16x32xf32, #tpu.memory_space<vmem>>, %arg2: memref<1x32xf32, #tpu.memory_space<vmem>>, %arg3: memref<32x32xf32, #tpu.memory_space<vmem>>, %arg4: memref<1x16xf32, #tpu.memory_space<vmem>>, %arg5: memref<16x32xf32, #tpu.memory_space<vmem>>, %arg6: memref<1x32xf32, #tpu.memory_space<vmem>>, %arg7: memref<16x32xf32, #tpu.memory_space<vmem>>, %arg8: memref<16x1xf32, #tpu.memory_space<vmem>>) attributes {dimension_semantics = [#tpu.dimension_semantics<parallel>], iteration_bounds = array<i64: 1>, scalar_prefetch = 0 : i64, scratch_operands = 1 : i64, tpu.core_type = #tpu.core_type<tc>, window_params = [{transform_indices = @transform_0, window_bounds = array<i64: 16, 32>}, {pipeline_mode = #tpu.pipeline_mode<synchronous>, transform_indices = @transform_1, window_bounds = array<i64: 1, 32>}, {pipeline_mode = #tpu.pipeline_mode<synchronous>, transform_indices = @transform_2, window_bounds = array<i64: 32, 32>}, {pipeline_mode = #tpu.pipeline_mode<synchronous>, transform_indices = @transform_3, window_bounds = array<i64: 1, 16>}, {pipeline_mode = #tpu.pipeline_mode<synchronous>, transform_indices = @transform_4, window_bounds = array<i64: 16, 32>}, {pipeline_mode = #tpu.pipeline_mode<synchronous>, transform_indices = @transform_5, window_bounds = array<i64: 1, 32>}, {transform_indices = @transform_6, window_bounds = array<i64: 16, 32>}]} {
    %c0 = arith.constant 0 : index
    %c0_0 = arith.constant 0 : index
    %0 = vector.load %arg1[%c0, %c0_0] : memref<16x32xf32, #tpu.memory_space<vmem>>, vector<16x32xf32>
    %c0_1 = arith.constant 0 : index
    %c0_2 = arith.constant 0 : index
    %1 = vector.load %arg3[%c0_1, %c0_2] : memref<32x32xf32, #tpu.memory_space<vmem>>, vector<32x32xf32>
    %cst = arith.constant dense<0.000000e+00> : vector<16x32xf32>
    %2 = tpu.matmul %0, %1, %cst {dimension_numbers = #tpu.dot_dimension_numbers<[1], [0], [0], [1], [0, 0, 1, 1], [], []>} : vector<16x32xf32>, vector<32x32xf32>, vector<16x32xf32> -> vector<16x32xf32>
    %c0_3 = arith.constant 0 : index
    %c0_4 = arith.constant 0 : index
    %3 = vector.load %arg2[%c0_3, %c0_4] : memref<1x32xf32, #tpu.memory_space<vmem>>, vector<1x32xf32>
    %4 = vector.broadcast %3 : vector<1x32xf32> to vector<16x32xf32>
    %5 = arith.subf %2, %4 : vector<16x32xf32>
    %6 = vector.extract_strided_slice %5 {offsets = [0, 0], sizes = [16, 16], strides = [1, 1]} : vector<16x32xf32> to vector<16x16xf32>
    %7 = vector.extract_strided_slice %5 {offsets = [0, 16], sizes = [16, 16], strides = [1, 1]} : vector<16x32xf32> to vector<16x16xf32>
    %8 = math.tanh %7 : vector<16x16xf32>
    %c0_5 = arith.constant 0 : index
    %c0_6 = arith.constant 0 : index
    %9 = vector.load %arg4[%c0_5, %c0_6] : memref<1x16xf32, #tpu.memory_space<vmem>>, vector<1x16xf32>
    %10 = vector.broadcast %9 : vector<1x16xf32> to vector<16x16xf32>
    %11 = arith.mulf %8, %10 : vector<16x16xf32>
    %cst_7 = arith.constant dense<0.000000e+00> : vector<16xf32>
    %12 = vector.multi_reduction <add>, %11, %cst_7 [1] : vector<16x16xf32> to vector<16xf32>
    %13 = vector.shape_cast %12 : vector<16xf32> to vector<16x1xf32>
    %c0_8 = arith.constant 0 : index
    %c0_9 = arith.constant 0 : index
    %14 = vector.load %arg8[%c0_8, %c0_9] : memref<16x1xf32, #tpu.memory_space<vmem>>, vector<16x1xf32>
    tpu.vector_store %arg8[%c0_8, %c0_9], %13 {strides = array<i32>} : memref<16x1xf32, #tpu.memory_space<vmem>>, vector<16x1xf32>,
    %c0_i32 = arith.constant 0 : i32
    %c2_i32 = arith.constant 2 : i32
    %15 = arith.addi %c0_i32, %c2_i32 : i32
    %c1_i32 = arith.constant 1 : i32
    scf.for %arg9 = %c0_i32 to %15 step %c1_i32  : i32 {
      %c1_i32_20 = arith.constant 1 : i32
      %25 = arith.muli %arg9, %c1_i32_20 : i32
      %c0_i32_21 = arith.constant 0 : i32
      %26 = arith.addi %c0_i32_21, %25 : i32
      %c8_i32 = arith.constant 8 : i32
      %27 = arith.muli %26, %c8_i32 : i32
      %28 = tpu.assume_multiple %27, 8 : i32
      %29 = arith.index_cast %28 : i32 to index
      %c0_22 = arith.constant 0 : index
      %30 = vector.load %arg8[%29, %c0_22] : memref<16x1xf32, #tpu.memory_space<vmem>>, vector<8x1xf32>
      %cst_23 = arith.constant dense<0xFF800000> : vector<1xf32>
      %31 = vector.multi_reduction <maximumf>, %30, %cst_23 [0] : vector<8x1xf32> to vector<1xf32>
      %32 = vector.shape_cast %31 : vector<1xf32> to vector<1x1xf32>
      %33 = vector.broadcast %32 : vector<1x1xf32> to vector<8x1xf32>
      %34 = arith.subf %30, %33 : vector<8x1xf32>
      %35 = math.exp %34 : vector<8x1xf32>
      %cst_24 = arith.constant dense<0.000000e+00> : vector<1xf32>
      %36 = vector.multi_reduction <add>, %35, %cst_24 [0] : vector<8x1xf32> to vector<1xf32>
      %37 = vector.shape_cast %36 : vector<1xf32> to vector<1x1xf32>
      %38 = tpu.reciprocal %37 {approx = true} : vector<1x1xf32> -> vector<1x1xf32>
      %39 = vector.broadcast %38 : vector<1x1xf32> to vector<8x1xf32>
      %40 = arith.mulf %35, %39 : vector<8x1xf32>
      %cst_25 = arith.constant 1.000000e+00 : f32
      %41 = vector.broadcast %cst_25 : f32 to vector<8x1xf32>
      %42 = arith.addf %40, %41 : vector<8x1xf32>
      %43 = arith.index_cast %28 : i32 to index
      %c0_26 = arith.constant 0 : index
      %44 = vector.load %arg8[%43, %c0_26] : memref<16x1xf32, #tpu.memory_space<vmem>>, vector<8x1xf32>
      tpu.vector_store %arg8[%43, %c0_26], %42 {strides = array<i32>} : memref<16x1xf32, #tpu.memory_space<vmem>>, vector<8x1xf32>,
    }
    %c2_i32_10 = arith.constant 2 : i32
    %c0_11 = arith.constant 0 : index
    %c0_12 = arith.constant 0 : index
    %16 = vector.load %arg8[%c0_11, %c0_12] : memref<16x1xf32, #tpu.memory_space<vmem>>, vector<16x1xf32>
    %17 = vector.broadcast %16 : vector<16x1xf32> to vector<16x16xf32>
    %18 = arith.mulf %17, %6 : vector<16x16xf32>
    %c0_13 = arith.constant 0 : index
    %c0_14 = arith.constant 0 : index
    %19 = vector.load %arg5[%c0_13, %c0_14] : memref<16x32xf32, #tpu.memory_space<vmem>>, vector<16x32xf32>
    %cst_15 = arith.constant dense<0.000000e+00> : vector<16x32xf32>
    %20 = tpu.matmul %18, %19, %cst_15 {dimension_numbers = #tpu.dot_dimension_numbers<[1], [0], [0], [1], [0, 0, 1, 1], [], []>} : vector<16x16xf32>, vector<16x32xf32>, vector<16x32xf32> -> vector<16x32xf32>
    %c0_16 = arith.constant 0 : index
    %c0_17 = arith.constant 0 : index
    %21 = vector.load %arg6[%c0_16, %c0_17] : memref<1x32xf32, #tpu.memory_space<vmem>>, vector<1x32xf32>
    %22 = vector.broadcast %21 : vector<1x32xf32> to vector<16x32xf32>
    %23 = arith.addf %20, %22 : vector<16x32xf32>
    %c0_18 = arith.constant 0 : index
    %c0_19 = arith.constant 0 : index
    %24 = vector.load %arg7[%c0_18, %c0_19] : memref<16x32xf32, #tpu.memory_space<vmem>>, vector<16x32xf32>
    tpu.vector_store %arg7[%c0_18, %c0_19], %23 {strides = array<i32>} : memref<16x32xf32, #tpu.memory_space<vmem>>, vector<16x32xf32>,
    return
  }
  func.func @transform_0(%arg0: i32) -> (i32, i32) {
    %c0_i32 = arith.constant 0 : i32
    %c0_i32_0 = arith.constant 0 : i32
    return %arg0, %c0_i32 : i32, i32
  }
  func.func @transform_1(%arg0: i32) -> (i32, i32) {
    %c0_i32 = arith.constant 0 : i32
    %c0_i32_0 = arith.constant 0 : i32
    %c0_i32_1 = arith.constant 0 : i32
    return %c0_i32, %c0_i32_0 : i32, i32
  }
  func.func @transform_2(%arg0: i32) -> (i32, i32) {
    %c0_i32 = arith.constant 0 : i32
    %c0_i32_0 = arith.constant 0 : i32
    %c0_i32_1 = arith.constant 0 : i32
    return %c0_i32, %c0_i32_0 : i32, i32
  }
  func.func @transform_3(%arg0: i32) -> (i32, i32) {
    %c0_i32 = arith.constant 0 : i32
    %c0_i32_0 = arith.constant 0 : i32
    %c0_i32_1 = arith.constant 0 : i32
    return %c0_i32, %c0_i32_0 : i32, i32
  }
  func.func @transform_4(%arg0: i32) -> (i32, i32) {
    %c0_i32 = arith.constant 0 : i32
    %c0_i32_0 = arith.constant 0 : i32
    %c0_i32_1 = arith.constant 0 : i32
    return %c0_i32, %c0_i32_0 : i32, i32
  }
  func.func @transform_5(%arg0: i32) -> (i32, i32) {
    %c0_i32 = arith.constant 0 : i32
    %c0_i32_0 = arith.constant 0 : i32
    %c0_i32_1 = arith.constant 0 : i32
    return %c0_i32, %c0_i32_0 : i32, i32
  }
  func.func @transform_6(%arg0: i32) -> (i32, i32) {
    %c0_i32 = arith.constant 0 : i32
    %c0_i32_0 = arith.constant 0 : i32
    return %arg0, %c0_i32 : i32, i32
  }
}

</mosaic_0001>

<llo_original>
// kernel: tpu_custom_call.1
$region0: #{tpu_custom_call.1}
  #allocation0 [shape = 'u32[]', space=smem, size = 0x4, offset = 0x4, fixed_abs, tag = 'smem constant byte address 0x4 - core index']
  #allocation1 [shape = 'u32[72,128]{1,0:T(1,128)}', space=vmem, size = 0x9000, scoped, tag = 'internal scratch']
  #allocation2 [shape = 'f32[16,1]{1,0:T(8,128)}', space=vmem, size = 0x2000, scoped, tag = 'scratch operand']
  %s0 = inlined_call_operand.hbm [shape: f32[16,32], index: 0, kind: input, shape index: {}]
  %s1 = inlined_call_operand.hbm [shape: f32[1,32], index: 1, kind: input, shape index: {}]
  %s2 = inlined_call_operand.hbm [shape: f32[32,32], index: 2, kind: input, shape index: {}]
  %s3 = inlined_call_operand.vmem [shape: f32[1,16], index: 3, kind: input, shape index: {}]
  %s4 = inlined_call_operand.hbm [shape: f32[16,32], index: 4, kind: input, shape index: {}]
  %s5 = inlined_call_operand.vmem [shape: f32[1,32], index: 5, kind: input, shape index: {}]
  %s6 = inlined_call_operand.hbm [shape: f32[16,32], index: 6, kind: output, shape index: {}]
  %s7 = sld [smem:[#allocation0]]
  $region57: #{tpu_custom_call.1} parent=0
    _
  %s9 = ssub.s32 1, %s7
  %s10 = scalar_select 0, %s9, %s7
  $region1: #{tpu_custom_call.1} parent=0
    #allocation3 [shape = 'u8[8192]{0}', space=vmem, size = 0x2000, scoped, tag = 'input window, operand 0, single buffered']
    #allocation4 [shape = 's32[1]{0}', space=sflag, size = 0x4, scoped, tag = 'scoped memory for tpu_custom_call.1']
    #allocation5 [shape = 's32[1]{0}', space=sflag, size = 0x4, scoped, tag = 'scoped memory for tpu_custom_call.1']
    #allocation6 [shape = 'u8[512]{0}', space=vmem, size = 0x400, scoped, tag = 'input window, operand 1, single buffered']
    #allocation7 [shape = 's32[1]{0}', space=sflag, size = 0x4, scoped, tag = 'scoped memory for tpu_custom_call.1']
    #allocation8 [shape = 'u8[16384]{0}', space=vmem, size = 0x4000, scoped, tag = 'input window, operand 2, single buffered']
    #allocation9 [shape = 'u8[8192]{0}', space=vmem, size = 0x2000, scoped, tag = 'input window, operand 4, single buffered']
    #allocation10 [shape = 's32[1]{0}', space=sflag, size = 0x4, scoped, tag = 'scoped memory for tpu_custom_call.1']
    #allocation11 [shape = 'u8[8192]{0}', space=vmem, size = 0x2000, scoped, tag = 'output window, operand 0, single buffered']
    %11 = vsyncpa [#allocation4], 0
    %12 = vsyncpa [#allocation7], 0
    %13 = vsyncpa [#allocation10], 0
    %14 = vsyncpa [#allocation5], 0
    // Predicated region
    $region2: #{tpu_custom_call.1} parent=1 // pred_check
      _
    $region3: #{tpu_custom_call.1} parent=1 // pred_check_branch
      %16 = sbr.rel (0) target = $region5
    $region4: #{tpu_custom_call.1} parent=1 // pred_region
      %18 = vsyncadd [#allocation4], 0
      %s19 = sshll.u32 %s0, 4
      %s20 = int_to_ptr.hbm [resolvable:$true] %s19
      %s21 = sshll.u32 [#allocation3], 4
      %s22 = int_to_ptr.vmem [resolvable:$true] %s21
      %27 = dma.hbm_to_vmem [thread:$0]  %s20, 256, %s22, [#allocation4], 128, 128, 8
    $region5: #{tpu_custom_call.1} parent=1 // pred_fallthru
      _
    // Predicated region
    $region6: #{tpu_custom_call.1} parent=1 // pred_check
      _
    $region7: #{tpu_custom_call.1} parent=1 // pred_check_branch
      %29 = sbr.rel (0) target = $region9
    $region8: #{tpu_custom_call.1} parent=1 // pred_region
      %31 = vsyncadd [#allocation7], 0
      %s33 = sshll.u32 %s1, 4
      %s34 = int_to_ptr.hbm [resolvable:$true] %s33
      %s35 = sshll.u32 [#allocation6], 4
      %s36 = int_to_ptr.vmem [resolvable:$true] %s35
      %38 = dma.hbm_to_vmem [thread:$0]  %s34, 16, %s36, [#allocation7]
    $region9: #{tpu_custom_call.1} parent=1 // pred_fallthru
      _
    // Predicated region
    $region10: #{tpu_custom_call.1} parent=1 // pred_check
      _
    $region11: #{tpu_custom_call.1} parent=1 // pred_check_branch
      %40 = sbr.rel (0) target = $region13
    $region12: #{tpu_custom_call.1} parent=1 // pred_region
      %42 = vsyncadd [#allocation7], 0
      %s43 = sshll.u32 %s2, 4
      %s44 = int_to_ptr.hbm [resolvable:$true] %s43
      %s45 = sshll.u32 [#allocation8], 4
      %s46 = int_to_ptr.vmem [resolvable:$true] %s45
      %51 = dma.hbm_to_vmem [thread:$0]  %s44, 512, %s46, [#allocation7], 128, 128, 8
    $region13: #{tpu_custom_call.1} parent=1 // pred_fallthru
      _
    // Predicated region
    $region14: #{tpu_custom_call.1} parent=1 // pred_check
      _
    $region15: #{tpu_custom_call.1} parent=1 // pred_check_branch
      %53 = sbr.rel (0) target = $region17
    $region16: #{tpu_custom_call.1} parent=1 // pred_region
      _
    $region17: #{tpu_custom_call.1} parent=1 // pred_fallthru
      _
    // Predicated region
    $region18: #{tpu_custom_call.1} parent=1 // pred_check
      _
    $region19: #{tpu_custom_call.1} parent=1 // pred_check_branch
      %55 = sbr.rel (0) target = $region21
    $region20: #{tpu_custom_call.1} parent=1 // pred_region
      %57 = vsyncadd [#allocation10], 0
      %s58 = sshll.u32 %s4, 4
      %s59 = int_to_ptr.hbm [resolvable:$true] %s58
      %s60 = sshll.u32 [#allocation9], 4
      %s61 = int_to_ptr.vmem [resolvable:$true] %s60
      %66 = dma.hbm_to_vmem [thread:$0]  %s59, 256, %s61, [#allocation10], 128, 128, 8
    $region21: #{tpu_custom_call.1} parent=1 // pred_fallthru
      _
    // Predicated region
    $region22: #{tpu_custom_call.1} parent=1 // pred_check
      _
    $region23: #{tpu_custom_call.1} parent=1 // pred_check_branch
      %68 = sbr.rel (0) target = $region25
    $region24: #{tpu_custom_call.1} parent=1 // pred_region
      _
    $region25: #{tpu_custom_call.1} parent=1 // pred_fallthru
      _
    // Predicated region
    $region26: #{tpu_custom_call.1} parent=1 // pred_check
      _
    $region27: #{tpu_custom_call.1} parent=1 // pred_check_branch
      %70 = sbr.rel (0) target = $region29
    $region28: #{tpu_custom_call.1} parent=1 // pred_region
      %72 = dma.done [#allocation4], 256
    $region29: #{tpu_custom_call.1} parent=1 // pred_fallthru
      _
    // Predicated region
    $region30: #{tpu_custom_call.1} parent=1 // pred_check
      _
    $region31: #{tpu_custom_call.1} parent=1 // pred_check_branch
      %74 = sbr.rel (0) target = $region33
    $region32: #{tpu_custom_call.1} parent=1 // pred_region
      %76 = dma.done [#allocation7], 16
    $region33: #{tpu_custom_call.1} parent=1 // pred_fallthru
      _
    // Predicated region
    $region34: #{tpu_custom_call.1} parent=1 // pred_check
      _
    $region35: #{tpu_custom_call.1} parent=1 // pred_check_branch
      %78 = sbr.rel (0) target = $region37
    $region36: #{tpu_custom_call.1} parent=1 // pred_region
      %80 = dma.done [#allocation7], 512
    $region37: #{tpu_custom_call.1} parent=1 // pred_fallthru
      _
    // Predicated region
    $region38: #{tpu_custom_call.1} parent=1 // pred_check
      _
    $region39: #{tpu_custom_call.1} parent=1 // pred_check_branch
      %82 = sbr.rel (0) target = $region41
    $region40: #{tpu_custom_call.1} parent=1 // pred_region
      %84 = dma.done [#allocation10], 256
    $region41: #{tpu_custom_call.1} parent=1 // pred_fallthru
      _
    %v85 = vld [vmem:[#allocation3] sm:$0xff]
    %v86 = vld [vmem:[#allocation3 + $0x8] sm:$0xff]
    %v87 = vld [vmem:[#allocation8] sm:$0xff]
    %v88 = vld [vmem:[#allocation8 + $0x8] sm:$0xff]
    %v89 = vld [vmem:[#allocation8 + $0x10] sm:$0xff]
    %v90 = vld [vmem:[#allocation8 + $0x18] sm:$0xff]
    %vm91 = vcmask 261120
    %v93 = vsel %vm91, %v85, 0
    %v96 = vsel %vm91, %v86, 0
    %98 = vmatpush.msra.mxu0 0.0
    %99 = vmatpush.msra.mxu0 0.0
    %100 = vmatpush.msra.mxu0 0.0
    %101 = vmatpush.msra.mxu0 0.0
    %102 = vmatpush.msra.mxu0 0.0
    %103 = vmatpush.msra.mxu0 0.0
    %104 = vmatpush.msra.mxu0 0.0
    %105 = vmatpush.msra.mxu0 0.0
    %106 = vmatpush.msra.mxu0 0.0
    %107 = vmatpush.msra.mxu0 0.0
    %108 = vmatpush.msra.mxu0 0.0
    %109 = vmatpush.msra.mxu0 0.0
    %110 = vmatpush.msra.mxu0 %v90
    %111 = vmatpush.msra.mxu0 %v89
    %112 = vmatpush.msra.mxu0 %v88
    %113 = vmatpush.msra.mxu0 %v87
    %114 = vmatmul.f32.gmra.mxu0 %v93
    %v115 = vpop.f32.mrf.mxu0
    %v116 = vadd.f32 0.0, %v115
    %117 = vmatmul.f32.gmra.mxu0 %v96
    %v118 = vpop.f32.mrf.mxu0
    %v119 = vadd.f32 0.0, %v118
    %120 = vdwg.mxu0
    %v121 = vld [vmem:[#allocation6] sm:$0x1]
    %v123 = vperm.slane %v121, 0
    %v125 = vsub.f32 %v116, %v123
    %v126 = vsub.f32 %v119, %v123
    %v127 = vtanh.pop %v125
    %v128 = vtanh.pop %v126
    %v129 = vld [vmem:[%s3] sm:$0x1]
    %v131 = vperm.slane %v129, 0
    %132 = vrot.lane.b32.xlu0 %v131, 16
    %v133 = vpop.permute.xlu0 %132
    %v135 = vmul.f32 %v127, %v133
    %v136 = vmul.f32 %v128, %v133
    %139 = vrot.lane.b32.xlu0 %v135, 112
    %v140 = vpop.permute.xlu0 %139
    %141 = vrot.lane.b32.xlu0 %v136, 112
    %v142 = vpop.permute.xlu0 %141
    %vm145 = vcmask 130048
    %v146 = vsel %vm145, %v140, 0.0
    %147 = vadd.xlane.f32.xlu0 %v146
    %v148 = vpop.xlane.xlu0 %147
    %v149 = vsel %vm145, %v142, 0.0
    %150 = vadd.xlane.f32.xlu0 %v149
    %v151 = vpop.xlane.xlu0 %150
    %vm152 = vcmask 7168
    %153 = vst.msk [vmem:[#allocation2] sm:$0xff] %vm152, %v148
    %154 = vst.msk [vmem:[#allocation2 + $0x8] sm:$0xff] %vm152, %v151
    loop: start=0, step=1, limit=2
    $region42: #{tpu_custom_call.1} parent=1 // loop_pre_header
      _
    $region43: #{tpu_custom_call.1} parent=1 // loop_header
      %s156 = sphi 0, %s160
      %p157 = scmp.ge.s32.totalorder %s156, 2
    $region44: #{tpu_custom_call.1} parent=1 // loop_header_branch
      %159 = sbr.rel (%p157) target = $region48
    $region45: #{tpu_custom_call.1} parent=1 // loop_body
      %s161 = smul.u32 %s156, 8
      %s162 = scalar_lea.vmem [#allocation2], %s161
      %v163 = vld [vmem:[%s162] sm:$0xff]
      %v164 = vsel %vm152, %v163, -inf
      %v165 = vrot.slane %v164, 4
      %v166 = vmax.f32 %v164, %v165
      %v167 = vrot.slane %v166, 2
      %v168 = vmax.f32 %v166, %v167
      %v169 = vrot.slane %v168, 1
      %v170 = vmax.f32 %v168, %v169
      %v171 = vsub.f32 %v163, %v170
      %v172 = vmul.f32 %v171, 1.442695
      %v173 = vpow.pop %v172
      %v174 = vsel %vm152, %v173, 0.0
      %v175 = vrot.slane %v174, 4
      %v176 = vadd.f32 %v174, %v175
      %v177 = vrot.slane %v176, 2
      %v178 = vadd.f32 %v176, %v177
      %v179 = vrot.slane %v178, 1
      %v180 = vadd.f32 %v178, %v179
      %v181 = vrcp.pop %v180
      %v182 = vmul.f32 %v173, %v181
      %v183 = vadd.f32 %v182, 1.0
      %184 = vst.msk [vmem:[%s162] sm:$0xff] %vm152, %v183
    $region46: #{tpu_custom_call.1} parent=1 // loop_footer
      %s160 = sadd.s32 1, %s156
    $region47: #{tpu_custom_call.1} parent=1 // loop_footer_branch
      %155 = sbr.rel target = $region43
    $region48: #{tpu_custom_call.1} parent=1 // loop_exit
      _
    %v185 = vld [vmem:[#allocation2] sm:$0xff]
    %v186 = vld [vmem:[#allocation2 + $0x8] sm:$0xff]
    %188 = vset.pattern.permute.xlu0 0
    %189 = vperm.xlu0 %188, %v185
    %v190 = vpop.permute.xlu0 %189
    %193 = vset.pattern.permute.xlu0 0
    %194 = vperm.xlu0 %193, %v186
    %v195 = vpop.permute.xlu0 %194
    %v197 = vmul.f32 %v190, %v125
    %v198 = vmul.f32 %v195, %v126
    %v199 = vld [vmem:[#allocation9] sm:$0xff]
    %v200 = vld [vmem:[#allocation9 + $0x8] sm:$0xff]
    %v201 = vld [vmem:[%s5] sm:$0x1]
    %v203 = vperm.slane %v201, 0
    %v206 = vsel %vm145, %v197, 0
    %v209 = vsel %vm145, %v198, 0
    %211 = vmatpush.msra.mxu0 0.0
    %212 = vmatpush.msra.mxu0 0.0
    %213 = vmatpush.msra.mxu0 0.0
    %214 = vmatpush.msra.mxu0 0.0
    %215 = vmatpush.msra.mxu0 0.0
    %216 = vmatpush.msra.mxu0 0.0
    %217 = vmatpush.msra.mxu0 0.0
    %218 = vmatpush.msra.mxu0 0.0
    %219 = vmatpush.msra.mxu0 0.0
    %220 = vmatpush.msra.mxu0 0.0
    %221 = vmatpush.msra.mxu0 0.0
    %222 = vmatpush.msra.mxu0 0.0
    %223 = vmatpush.msra.mxu0 0.0
    %224 = vmatpush.msra.mxu0 0.0
    %225 = vmatpush.msra.mxu0 %v200
    %226 = vmatpush.msra.mxu0 %v199
    %227 = vmatmul.f32.gmra.mxu0 %v206
    %v228 = vpop.f32.mrf.mxu0
    %v229 = vadd.f32 %v203, %v228
    %230 = vmatmul.f32.gmra.mxu0 %v209
    %v231 = vpop.f32.mrf.mxu0
    %v232 = vadd.f32 %v203, %v231
    %233 = vdwg.mxu0
    %234 = vst.msk [vmem:[#allocation11] sm:$0xff] %vm91, %v229
    %235 = vst.msk [vmem:[#allocation11 + $0x8] sm:$0xff] %vm91, %v232
    // Predicated region
    $region49: #{tpu_custom_call.1} parent=1 // pred_check
      _
    $region50: #{tpu_custom_call.1} parent=1 // pred_check_branch
      %237 = sbr.rel (0) target = $region52
    $region51: #{tpu_custom_call.1} parent=1 // pred_region
      %239 = vsyncadd [#allocation5], 0
      %s240 = sshll.u32 [#allocation11], 4
      %s241 = int_to_ptr.vmem [resolvable:$true] %s240
      %s242 = sshll.u32 %s6, 4
      %s243 = int_to_ptr.hbm [resolvable:$true] %s242
      %248 = dma.vmem_to_hbm [thread:$0]  %s241, 256, %s243, [#allocation5], 128, 128, 8
    $region52: #{tpu_custom_call.1} parent=1 // pred_fallthru
      _
    // Predicated region
    $region53: #{tpu_custom_call.1} parent=1 // pred_check
      _
    $region54: #{tpu_custom_call.1} parent=1 // pred_check_branch
      %250 = sbr.rel (0) target = $region56
    $region55: #{tpu_custom_call.1} parent=1 // pred_region
      %252 = dma.done [#allocation5], 256
    $region56: #{tpu_custom_call.1} parent=1 // pred_fallthru
      _
    %253 = vsyncpa [#allocation4], 1
    %254 = vsyncpa [#allocation7], 1
    %255 = vsyncpa [#allocation10], 1
    %256 = vsyncpa [#allocation5], 1

</llo_original>
